<compile_context>
chip_gen: v5e
topology: v5e:2x2
jax: 0.10.0
libtpu: 0.0.40
codegen_flags: <defaults>
</compile_context>

<pallas_src>
import jax
import jax.numpy as jnp
from jax.experimental import pallas as pl
from jax.experimental.pallas import tpu as pltpu

_LANE = 128


def _sqrt_kernel(x_ref, o_ref):
    # Pure EUP work; the binding resource is HBM DMA, keep compute trivial.
    o_ref[...] = jnp.sqrt(x_ref[...])


def _sublane(dtype) -> int:
    size = jnp.dtype(dtype).itemsize
    if size >= 4:
        return 8
    if size == 2:
        return 16
    return 32


def _sqrt_2d(x2d: jax.Array, tile_rows: int) -> jax.Array:
    rows, lane = x2d.shape
    grid = (pl.cdiv(rows, tile_rows),)
    return pl.pallas_call(
        _sqrt_kernel,
        out_shape=jax.ShapeDtypeStruct((rows, lane), x2d.dtype),
        grid_spec=pltpu.PrefetchScalarGridSpec(
            num_scalar_prefetch=0,
            grid=grid,
            in_specs=[pl.BlockSpec((tile_rows, lane), lambda i: (i, 0))],
            out_specs=pl.BlockSpec((tile_rows, lane), lambda i: (i, 0)),
        ),
        compiler_params=pltpu.CompilerParams(
            dimension_semantics=("parallel",),
        ),
    )(x2d)


def square_root(x: jax.Array, *, tile_rows: int = 4096) -> jax.Array:
    """Elementwise sqrt via a tiled Pallas TPU kernel (any shape, float dtype)."""
    if not jnp.issubdtype(x.dtype, jnp.floating):
        raise TypeError(
            f"square_root expects a floating dtype (got {x.dtype}); "
            "torch.sqrt-style int promotion is not supported here."
        )

    orig_shape = x.shape
    n = x.size
    if n == 0:
        return x

    # Enforce sublane alignment of the block for narrow dtypes.
    sub = _sublane(x.dtype)
    tile_rows = max(sub, ((tile_rows + sub - 1) // sub) * sub)

    flat = x.reshape(-1)

    if n % _LANE == 0:
        # Fast path: pure metadata reshape, no pad, no post-slice.
        rows = n // _LANE
        eff_tile = min(tile_rows, ((rows + sub - 1) // sub) * sub)
        out2d = _sqrt_2d(flat.reshape(rows, _LANE), eff_tile)
        return out2d.reshape(orig_shape)

    # Fallback: total not divisible by 128 lanes -> pad once to a lane
    # multiple (<= 127 extra elements).  Ragged rows are still handled
    # in-kernel via partial blocks (no padding up to tile_rows*128).
    n_pad = ((n + _LANE - 1) // _LANE) * _LANE
    flat_p = jnp.pad(flat, (0, n_pad - n))
    rows = n_pad // _LANE
    eff_tile = min(tile_rows, ((rows + sub - 1) // sub) * sub)
    out2d = _sqrt_2d(flat_p.reshape(rows, _LANE), eff_tile)
    return out2d.reshape(-1)[:n].reshape(orig_shape)


if __name__ == "__main__":
    key = jax.random.PRNGKey(0)
    k1, k2 = jax.random.split(key)

    # Small NCHW-like input (total elements divisible by 128 -> pad-free path).
    x = jax.random.uniform(k1, (2, 4, 16, 16), dtype=jnp.float32,
                           minval=0.0, maxval=10.0)
    y = jax.block_until_ready(square_root(x))
    assert y.shape == x.shape and y.dtype == x.dtype
    assert jnp.allclose(y, jnp.sqrt(x), atol=1e-6, rtol=1e-6)

    # Ragged total (not a multiple of 128) -> fallback path.
    x2 = jax.random.uniform(k2, (3, 5, 7), dtype=jnp.float32,
                            minval=0.0, maxval=10.0)
    y2 = jax.block_until_ready(square_root(x2))
    assert y2.shape == x2.shape and y2.dtype == x2.dtype
    assert jnp.allclose(y2, jnp.sqrt(x2), atol=1e-6, rtol=1e-6)

    print("KERNEL_OK")
</pallas_src>

<mosaic_0001>
module attributes {stable_mosaic.version = 11 : i64} {
  func.func @_sqrt_kernel(%arg0: i32, %arg1: memref<16x128xf32, #tpu.memory_space<vmem>>, %arg2: memref<16x128xf32, #tpu.memory_space<vmem>>) attributes {dimension_semantics = [#tpu.dimension_semantics<parallel>], iteration_bounds = array<i64: 1>, scalar_prefetch = 0 : i64, scratch_operands = 0 : i64, tpu.core_type = #tpu.core_type<tc>, window_params = [{transform_indices = @transform_0, window_bounds = array<i64: 16, 128>}, {transform_indices = @transform_1, window_bounds = array<i64: 16, 128>}]} {
    %c0 = arith.constant 0 : index
    %c0_0 = arith.constant 0 : index
    %0 = vector.load %arg1[%c0, %c0_0] : memref<16x128xf32, #tpu.memory_space<vmem>>, vector<16x128xf32>
    %1 = math.sqrt %0 : vector<16x128xf32>
    %c0_1 = arith.constant 0 : index
    %c0_2 = arith.constant 0 : index
    %2 = vector.load %arg2[%c0_1, %c0_2] : memref<16x128xf32, #tpu.memory_space<vmem>>, vector<16x128xf32>
    tpu.vector_store %arg2[%c0_1, %c0_2], %1 {strides = array<i32>} : memref<16x128xf32, #tpu.memory_space<vmem>>, vector<16x128xf32>,
    return
  }
  func.func @transform_0(%arg0: i32) -> (i32, i32) {
    %c0_i32 = arith.constant 0 : i32
    %c0_i32_0 = arith.constant 0 : i32
    return %arg0, %c0_i32 : i32, i32
  }
  func.func @transform_1(%arg0: i32) -> (i32, i32) {
    %c0_i32 = arith.constant 0 : i32
    %c0_i32_0 = arith.constant 0 : i32
    return %arg0, %c0_i32 : i32, i32
  }
}

</mosaic_0001>

<llo_original>
// kernel: tpu_custom_call.1
$region0: #{tpu_custom_call.1}
  #allocation0 [shape = 'u32[]', space=smem, size = 0x4, offset = 0x4, fixed_abs, tag = 'smem constant byte address 0x4 - core index']
  #allocation1 [shape = 'u32[72,128]{1,0:T(1,128)}', space=vmem, size = 0x9000, scoped, tag = 'internal scratch']
  %s0 = inlined_call_operand.hbm [shape: f32[16,128], index: 0, kind: input, shape index: {}]
  %s1 = inlined_call_operand.hbm [shape: f32[16,128], index: 1, kind: output, shape index: {}]
  %s2 = sld [smem:[#allocation0]]
  $region18: #{tpu_custom_call.1} parent=0
    _
  %s4 = ssub.s32 1, %s2
  %s5 = scalar_select 0, %s4, %s2
  $region1: #{tpu_custom_call.1} parent=0
    #allocation2 [shape = 'u8[8192]{0}', space=vmem, size = 0x2000, scoped, tag = 'input window, operand 0, single buffered']
    #allocation3 [shape = 's32[1]{0}', space=sflag, size = 0x4, scoped, tag = 'scoped memory for tpu_custom_call.1']
    #allocation4 [shape = 's32[1]{0}', space=sflag, size = 0x4, scoped, tag = 'scoped memory for tpu_custom_call.1']
    #allocation5 [shape = 'u8[8192]{0}', space=vmem, size = 0x2000, scoped, tag = 'output window, operand 0, single buffered']
    %6 = vsyncpa [#allocation3], 0
    %7 = vsyncpa [#allocation4], 0
    // Predicated region
    $region2: #{tpu_custom_call.1} parent=1 // pred_check
      _
    $region3: #{tpu_custom_call.1} parent=1 // pred_check_branch
      %9 = sbr.rel (0) target = $region5
    $region4: #{tpu_custom_call.1} parent=1 // pred_region
      %11 = vsyncadd [#allocation3], 0
      %s12 = sshll.u32 %s0, 4
      %s13 = int_to_ptr.hbm [resolvable:$true] %s12
      %s14 = sshll.u32 [#allocation2], 4
      %s15 = int_to_ptr.vmem [resolvable:$true] %s14
      %20 = dma.hbm_to_vmem [thread:$0]  %s13, 256, %s15, [#allocation3], 128, 128, 8
    $region5: #{tpu_custom_call.1} parent=1 // pred_fallthru
      _
    // Predicated region
    $region6: #{tpu_custom_call.1} parent=1 // pred_check
      _
    $region7: #{tpu_custom_call.1} parent=1 // pred_check_branch
      %22 = sbr.rel (0) target = $region9
    $region8: #{tpu_custom_call.1} parent=1 // pred_region
      %24 = dma.done [#allocation3], 256
    $region9: #{tpu_custom_call.1} parent=1 // pred_fallthru
      _
    %v25 = vld [vmem:[#allocation2] sm:$0xff]
    %v26 = vld [vmem:[#allocation2 + $0x8] sm:$0xff]
    %v27 = vrsqrt.pop %v25
    %v28 = vmul.f32 %v27, %v25
    %v29 = vmul.f32 %v28, %v27
    %v30 = vmul.f32 0.5, %v29
    %v31 = vsub.f32 1.5, %v30
    %v32 = vmul.f32 %v27, %v31
    %v33 = vmul.f32 %v25, %v32
    %vm34 = vcmp.eq.f32.partialorder %v25, inf
    %v35 = vsel %vm34, %v25, %v33
    %vm36 = vcmp.eq.f32.partialorder %v25, 0.0
    %v37 = vand.u32 %v25, 2147483648
    %v38 = vsel %vm36, %v37, %v35
    %v39 = vrsqrt.pop %v26
    %v40 = vmul.f32 %v39, %v26
    %v41 = vmul.f32 %v40, %v39
    %v42 = vmul.f32 0.5, %v41
    %v43 = vsub.f32 1.5, %v42
    %v44 = vmul.f32 %v39, %v43
    %v45 = vmul.f32 %v26, %v44
    %vm46 = vcmp.eq.f32.partialorder %v26, inf
    %v47 = vsel %vm46, %v26, %v45
    %vm48 = vcmp.eq.f32.partialorder %v26, 0.0
    %v49 = vand.u32 %v26, 2147483648
    %v50 = vsel %vm48, %v49, %v47
    %51 = vst [vmem:[#allocation5] sm:$0xff] %v38
    %52 = vst [vmem:[#allocation5 + $0x8] sm:$0xff] %v50
    // Predicated region
    $region10: #{tpu_custom_call.1} parent=1 // pred_check
      _
    $region11: #{tpu_custom_call.1} parent=1 // pred_check_branch
      %54 = sbr.rel (0) target = $region13
    $region12: #{tpu_custom_call.1} parent=1 // pred_region
      %56 = vsyncadd [#allocation4], 0
      %s57 = sshll.u32 [#allocation5], 4
      %s58 = int_to_ptr.vmem [resolvable:$true] %s57
      %s59 = sshll.u32 %s1, 4
      %s60 = int_to_ptr.hbm [resolvable:$true] %s59
      %65 = dma.vmem_to_hbm [thread:$0]  %s58, 256, %s60, [#allocation4], 128, 128, 8
    $region13: #{tpu_custom_call.1} parent=1 // pred_fallthru
      _
    // Predicated region
    $region14: #{tpu_custom_call.1} parent=1 // pred_check
      _
    $region15: #{tpu_custom_call.1} parent=1 // pred_check_branch
      %67 = sbr.rel (0) target = $region17
    $region16: #{tpu_custom_call.1} parent=1 // pred_region
      %69 = dma.done [#allocation4], 256
    $region17: #{tpu_custom_call.1} parent=1 // pred_fallthru
      _
    %70 = vsyncpa [#allocation3], 1
    %71 = vsyncpa [#allocation4], 1

</llo_original>
